<compile_context>
chip_gen: v6e
topology: v6e:2x2x1
jax: 0.10.0
libtpu: 0.0.40
codegen_flags: <defaults>
</compile_context>

<pallas_src>
import functools

import jax
import jax.numpy as jnp
from jax.experimental import pallas as pl
from jax.experimental.pallas import tpu as pltpu


def _round_up(x, m):
    return (x + m - 1) // m * m


# --------------------------------------------------------------------------
# Fused small-graph kernel:  out = adj @ (x @ W) + b   (single pallas_call)
# --------------------------------------------------------------------------
def _fused_kernel(x_ref, w_ref, adj_ref, b_ref, o_ref, sup_ref):
    # support = x @ W (recomputed per row-tile; negligible at the sizes this
    # path is gated to).  f32 accumulation, stored in the MXU operand dtype.
    sup_ref[...] = jnp.dot(
        x_ref[...], w_ref[...], preferred_element_type=jnp.float32
    ).astype(sup_ref.dtype)
    o_ref[...] = (
        jnp.dot(adj_ref[...], sup_ref[...], preferred_element_type=jnp.float32)
        + b_ref[...]
    ).astype(o_ref.dtype)


# --------------------------------------------------------------------------
# Stage 1 (large graphs): support = x @ W   (lane-dense, padded)
# --------------------------------------------------------------------------
def _support_kernel(x_ref, w_ref, o_ref):
    o_ref[...] = jnp.dot(
        x_ref[...], w_ref[...], preferred_element_type=jnp.float32
    ).astype(o_ref.dtype)


# --------------------------------------------------------------------------
# Stage 2 (large graphs): out = adj @ support + b, tiled over (rows, k),
# accumulating directly into the f32 output block (constant index across k).
# --------------------------------------------------------------------------
def _make_aggregate_kernel(resident_support, tk):
    def kernel(adj_ref, sup_ref, b_ref, o_ref):
        k = pl.program_id(1)

        @pl.when(k == 0)
        def _():
            o_ref[...] = jnp.zeros_like(o_ref)

        if resident_support:
            start = pl.multiple_of(k * tk, 128)
            sup = sup_ref[pl.ds(start, tk), :]
        else:
            sup = sup_ref[...]

        o_ref[...] += jnp.dot(
            adj_ref[...], sup, preferred_element_type=jnp.float32
        )

        @pl.when(k == pl.num_programs(1) - 1)
        def _():
            o_ref[...] += b_ref[...]

    return kernel


def _gcn_forward_impl(x, weight, adj, bias, *, mxu_dtype, force_two_stage):
    n, f_in = x.shape
    f_out = weight.shape[1]
    dt = jnp.dtype(mxu_dtype)
    itemsize = dt.itemsize

    # Lane-dense padding of the feature axes (no masked vst.msk stores).
    f_in_p = _round_up(f_in, 128)
    f_out_p = _round_up(f_out, 128)
    n_128 = _round_up(n, 128)

    bias_f32 = bias.astype(jnp.float32)

    # ---------------- fused small-graph path --------------------------------
    n_pf = n_128
    tm_f = n_pf if n_pf <= 128 else 128  # >=2 row tiles (megacore) when N>=256
    fused_bytes = (
        2 * (n_pf * f_in_p + f_in_p * f_out_p + tm_f * n_pf) * itemsize
        + 2 * (f_out_p + tm_f * f_out_p) * 4
        + n_pf * f_out_p * itemsize
    )
    use_fused = (not force_two_stage) and fused_bytes <= (24 << 20)

    if use_fused:
        n_p, tm = n_pf, tm_f
        # Cast-before-pad: padded operands built directly in the MXU dtype.
        x_p = jnp.zeros((n_p, f_in_p), dt).at[:n, :f_in].set(x.astype(dt))
        w_p = jnp.zeros((f_in_p, f_out_p), dt).at[:f_in, :f_out].set(
            weight.astype(dt)
        )
        adj_p = jnp.zeros((n_p, n_p), dt).at[:n, :n].set(adj.astype(dt))
        b_p = jnp.zeros((1, f_out_p), jnp.float32).at[0, :f_out].set(bias_f32)

        vmem_limit = int(min(48 << 20, max(32 << 20, fused_bytes + (4 << 20))))

        out_p = pl.pallas_call(
            _fused_kernel,
            out_shape=jax.ShapeDtypeStruct((n_p, f_out_p), jnp.float32),
            grid_spec=pltpu.PrefetchScalarGridSpec(
                num_scalar_prefetch=0,
                grid=(n_p // tm,),
                in_specs=[
                    pl.BlockSpec((n_p, f_in_p), lambda i: (0, 0)),
                    pl.BlockSpec((f_in_p, f_out_p), lambda i: (0, 0)),
                    pl.BlockSpec((tm, n_p), lambda i: (i, 0)),
                    pl.BlockSpec((1, f_out_p), lambda i: (0, 0)),
                ],
                out_specs=pl.BlockSpec((tm, f_out_p), lambda i: (i, 0)),
                scratch_shapes=[pltpu.VMEM((n_p, f_out_p), dt)],
            ),
            compiler_params=pltpu.CompilerParams(
                dimension_semantics=("parallel",),
                vmem_limit_bytes=vmem_limit,
            ),
        )(x_p, w_p, adj_p, b_p)
        return out_p[:n, :f_out]

    # ---------------- two-stage large-graph path ----------------------------
    if n_128 <= 1024:
        n_p = n_128
        tk = n_p
        tm = n_p if n_p < 256 else 128  # >=2 row tiles when possible
    else:
        tk = 1024
        n_p = _round_up(n, tk)
        tm = 512

    x_p = jnp.zeros((n_p, f_in_p), dt).at[:n, :f_in].set(x.astype(dt))
    w_p = jnp.zeros((f_in_p, f_out_p), dt).at[:f_in, :f_out].set(weight.astype(dt))
    adj_p = jnp.zeros((n_p, n_p), dt).at[:n, :n].set(adj.astype(dt))
    b_p = jnp.zeros((1, f_out_p), jnp.float32).at[0, :f_out].set(bias_f32)

    # ---- Stage 1: support = x @ W, computed once, lane-dense in HBM ----
    support = pl.pallas_call(
        _support_kernel,
        out_shape=jax.ShapeDtypeStruct((n_p, f_out_p), dt),
        grid_spec=pltpu.PrefetchScalarGridSpec(
            num_scalar_prefetch=0,
            grid=(n_p // tm,),
            in_specs=[
                pl.BlockSpec((tm, f_in_p), lambda i: (i, 0)),
                pl.BlockSpec((f_in_p, f_out_p), lambda i: (0, 0)),
            ],
            out_specs=pl.BlockSpec((tm, f_out_p), lambda i: (i, 0)),
        ),
        compiler_params=pltpu.CompilerParams(
            dimension_semantics=("parallel",),
            vmem_limit_bytes=48 << 20,
        ),
    )(x_p, w_p)

    # ---- Stage 2: out = adj @ support + bias ----
    # Keep support fully VMEM-resident (read once from HBM) when it fits the
    # v7x budget; otherwise fall back to k-tiled streaming of support.
    sup_bytes = n_p * f_out_p * itemsize
    resident = (2 * sup_bytes) <= (16 << 20)
    if resident:
        sup_spec = pl.BlockSpec((n_p, f_out_p), lambda i, k: (0, 0))
    else:
        sup_spec = pl.BlockSpec((tk, f_out_p), lambda i, k: (k, 0))

    out_p = pl.pallas_call(
        _make_aggregate_kernel(resident, tk),
        out_shape=jax.ShapeDtypeStruct((n_p, f_out_p), jnp.float32),
        grid_spec=pltpu.PrefetchScalarGridSpec(
            num_scalar_prefetch=0,
            grid=(n_p // tm, n_p // tk),
            in_specs=[
                pl.BlockSpec((tm, tk), lambda i, k: (i, k)),
                sup_spec,
                pl.BlockSpec((1, f_out_p), lambda i, k: (0, 0)),
            ],
            out_specs=pl.BlockSpec((tm, f_out_p), lambda i, k: (i, 0)),
        ),
        compiler_params=pltpu.CompilerParams(
            dimension_semantics=("parallel", "arbitrary"),
            vmem_limit_bytes=48 << 20,
        ),
    )(adj_p, support, b_p)

    return out_p[:n, :f_out]


@functools.partial(jax.jit, static_argnames=("mxu_dtype", "force_two_stage"))
def gcn_forward(x, weight, adj, bias, *, mxu_dtype=jnp.bfloat16,
                force_two_stage=False):
    """GCN layer forward: adj @ (x @ weight) + bias.

    x: [N, F_in], weight: [F_in, F_out], adj: [N, N] (dense), bias: [F_out].
    mxu_dtype: MXU operand dtype (bf16 default for throughput; f32 opt-in).
    Accumulation and the bias epilogue are always f32.  Returns f32 [N, F_out].
    """
    return _gcn_forward_impl(
        x, weight, adj, bias, mxu_dtype=mxu_dtype, force_two_stage=force_two_stage
    )


if __name__ == "__main__":
    # Module config (synthetic, mirrors reset_parameters()).
    N = 128      # number of graph nodes
    F_IN = 64    # in_features
    F_OUT = 32   # out_features

    key = jax.random.PRNGKey(0)
    k_x, k_adj, k_w, k_b = jax.random.split(key, 4)

    x = jax.random.normal(k_x, (N, F_IN), dtype=jnp.float32)
    adj = jax.random.uniform(k_adj, (N, N), dtype=jnp.float32)

    stdv = 1.0 / (F_OUT ** 0.5)
    weight = jax.random.uniform(
        k_w, (F_IN, F_OUT), dtype=jnp.float32, minval=-stdv, maxval=stdv
    )
    bias = jax.random.uniform(
        k_b, (F_OUT,), dtype=jnp.float32, minval=-stdv, maxval=stdv
    )

    ref = adj @ (x @ weight) + bias

    # f32 operand path, fused small-graph kernel.
    out_f32 = jax.block_until_ready(
        gcn_forward(x, weight, adj, bias, mxu_dtype=jnp.float32)
    )
    assert out_f32.shape == (N, F_OUT)
    assert jnp.allclose(out_f32, ref, atol=2e-2, rtol=2e-2)

    # Default bf16 operand path (f32 accumulation), fused kernel.
    out_bf16 = jax.block_until_ready(gcn_forward(x, weight, adj, bias))
    assert out_bf16.shape == (N, F_OUT)
    assert jnp.allclose(out_bf16, ref, atol=0.5, rtol=5e-2)

    # Force the two-stage (tiled, VMEM-resident support) path as well.
    out_ts = jax.block_until_ready(
        gcn_forward(x, weight, adj, bias, mxu_dtype=jnp.float32,
                    force_two_stage=True)
    )
    assert out_ts.shape == (N, F_OUT)
    assert jnp.allclose(out_ts, ref, atol=2e-2, rtol=2e-2)

    print("KERNEL_OK")
</pallas_src>

<mosaic_0001>
module attributes {stable_mosaic.version = 11 : i64} {
  func.func @_fused_kernel(%arg0: i32, %arg1: memref<128x128xf32, #tpu.memory_space<vmem>>, %arg2: memref<128x128xf32, #tpu.memory_space<vmem>>, %arg3: memref<128x128xf32, #tpu.memory_space<vmem>>, %arg4: memref<1x128xf32, #tpu.memory_space<vmem>>, %arg5: memref<128x128xf32, #tpu.memory_space<vmem>>, %arg6: memref<128x128xf32, #tpu.memory_space<vmem>>) attributes {dimension_semantics = [#tpu.dimension_semantics<parallel>], iteration_bounds = array<i64: 1>, scalar_prefetch = 0 : i64, scratch_operands = 1 : i64, tpu.core_type = #tpu.core_type<tc>, window_params = [{pipeline_mode = #tpu.pipeline_mode<synchronous>, transform_indices = @transform_0, window_bounds = array<i64: 128, 128>}, {pipeline_mode = #tpu.pipeline_mode<synchronous>, transform_indices = @transform_1, window_bounds = array<i64: 128, 128>}, {transform_indices = @transform_2, window_bounds = array<i64: 128, 128>}, {pipeline_mode = #tpu.pipeline_mode<synchronous>, transform_indices = @transform_3, window_bounds = array<i64: 1, 128>}, {transform_indices = @transform_4, window_bounds = array<i64: 128, 128>}]} {
    %c0 = arith.constant 0 : index
    %c0_0 = arith.constant 0 : index
    %0 = vector.load %arg1[%c0, %c0_0] : memref<128x128xf32, #tpu.memory_space<vmem>>, vector<128x128xf32>
    %c0_1 = arith.constant 0 : index
    %c0_2 = arith.constant 0 : index
    %1 = vector.load %arg2[%c0_1, %c0_2] : memref<128x128xf32, #tpu.memory_space<vmem>>, vector<128x128xf32>
    %cst = arith.constant dense<0.000000e+00> : vector<128x128xf32>
    %2 = tpu.matmul %0, %1, %cst {dimension_numbers = #tpu.dot_dimension_numbers<[1], [0], [0], [1], [0, 0, 1, 1], [], []>} : vector<128x128xf32>, vector<128x128xf32>, vector<128x128xf32> -> vector<128x128xf32>
    %c0_3 = arith.constant 0 : index
    %c0_4 = arith.constant 0 : index
    %3 = vector.load %arg6[%c0_3, %c0_4] : memref<128x128xf32, #tpu.memory_space<vmem>>, vector<128x128xf32>
    tpu.vector_store %arg6[%c0_3, %c0_4], %2 {strides = array<i32>} : memref<128x128xf32, #tpu.memory_space<vmem>>, vector<128x128xf32>,
    %c0_5 = arith.constant 0 : index
    %c0_6 = arith.constant 0 : index
    %4 = vector.load %arg3[%c0_5, %c0_6] : memref<128x128xf32, #tpu.memory_space<vmem>>, vector<128x128xf32>
    %c0_7 = arith.constant 0 : index
    %c0_8 = arith.constant 0 : index
    %5 = vector.load %arg6[%c0_7, %c0_8] : memref<128x128xf32, #tpu.memory_space<vmem>>, vector<128x128xf32>
    %cst_9 = arith.constant dense<0.000000e+00> : vector<128x128xf32>
    %6 = tpu.matmul %4, %5, %cst_9 {dimension_numbers = #tpu.dot_dimension_numbers<[1], [0], [0], [1], [0, 0, 1, 1], [], []>} : vector<128x128xf32>, vector<128x128xf32>, vector<128x128xf32> -> vector<128x128xf32>
    %c0_10 = arith.constant 0 : index
    %c0_11 = arith.constant 0 : index
    %7 = vector.load %arg4[%c0_10, %c0_11] : memref<1x128xf32, #tpu.memory_space<vmem>>, vector<1x128xf32>
    %8 = vector.broadcast %7 : vector<1x128xf32> to vector<128x128xf32>
    %9 = arith.addf %6, %8 : vector<128x128xf32>
    %c0_12 = arith.constant 0 : index
    %c0_13 = arith.constant 0 : index
    %10 = vector.load %arg5[%c0_12, %c0_13] : memref<128x128xf32, #tpu.memory_space<vmem>>, vector<128x128xf32>
    tpu.vector_store %arg5[%c0_12, %c0_13], %9 {strides = array<i32>} : memref<128x128xf32, #tpu.memory_space<vmem>>, vector<128x128xf32>,
    return
  }
  func.func @transform_0(%arg0: i32) -> (i32, i32) {
    %c0_i32 = arith.constant 0 : i32
    %c0_i32_0 = arith.constant 0 : i32
    %c0_i32_1 = arith.constant 0 : i32
    return %c0_i32, %c0_i32_0 : i32, i32
  }
  func.func @transform_1(%arg0: i32) -> (i32, i32) {
    %c0_i32 = arith.constant 0 : i32
    %c0_i32_0 = arith.constant 0 : i32
    %c0_i32_1 = arith.constant 0 : i32
    return %c0_i32, %c0_i32_0 : i32, i32
  }
  func.func @transform_2(%arg0: i32) -> (i32, i32) {
    %c0_i32 = arith.constant 0 : i32
    %c0_i32_0 = arith.constant 0 : i32
    return %arg0, %c0_i32 : i32, i32
  }
  func.func @transform_3(%arg0: i32) -> (i32, i32) {
    %c0_i32 = arith.constant 0 : i32
    %c0_i32_0 = arith.constant 0 : i32
    %c0_i32_1 = arith.constant 0 : i32
    return %c0_i32, %c0_i32_0 : i32, i32
  }
  func.func @transform_4(%arg0: i32) -> (i32, i32) {
    %c0_i32 = arith.constant 0 : i32
    %c0_i32_0 = arith.constant 0 : i32
    return %arg0, %c0_i32 : i32, i32
  }
}

</mosaic_0001>

<llo_original>
// kernel: gcn_forward.1
$region0: #{gcn_forward.1}
  #allocation0 [shape = 'u32[]', space=smem, size = 0x4, offset = 0x4, fixed_abs, tag = 'smem constant byte address 0x4 - core index']
  #allocation1 [shape = 'u32[144,128]{1,0:T(1,128)}', space=vmem, size = 0x12000, scoped, tag = 'internal scratch']
  #allocation2 [shape = 'f32[128,128]{1,0:T(8,128)}', space=vmem, size = 0x10000, scoped, tag = 'scratch operand']
  %s0 = inlined_call_operand.vmem [shape: f32[128,128], index: 0, kind: input, shape index: {}]
  %s1 = inlined_call_operand.vmem [shape: f32[128,128], index: 1, kind: input, shape index: {}]
  %s2 = inlined_call_operand.vmem [shape: f32[128,128], index: 2, kind: input, shape index: {}]
  %s3 = inlined_call_operand.vmem [shape: f32[1,128], index: 3, kind: input, shape index: {}]
  %s4 = inlined_call_operand.vmem [shape: f32[128,128], index: 4, kind: output, shape index: {}]
  %s5 = sld [smem:[#allocation0]]
  $region26: #{gcn_forward.1} parent=0
    _
  %s7 = ssub.s32 1, %s5
  %s8 = scalar_select 0, %s7, %s5
  // Predicated region
  $region2: #{gcn_forward.1} parent=0 // pred_check
    _
  $region3: #{gcn_forward.1} parent=0 // pred_check_branch
    %10 = sbr.rel (0) target = $region5
  $region4: #{gcn_forward.1} parent=0 // pred_region
    _
  $region5: #{gcn_forward.1} parent=0 // pred_fallthru
    _
  // Predicated region
  $region6: #{gcn_forward.1} parent=0 // pred_check
    _
  $region7: #{gcn_forward.1} parent=0 // pred_check_branch
    %12 = sbr.rel (0) target = $region9
  $region8: #{gcn_forward.1} parent=0 // pred_region
    _
  $region9: #{gcn_forward.1} parent=0 // pred_fallthru
    _
  // Predicated region
  $region10: #{gcn_forward.1} parent=0 // pred_check
    _
  $region11: #{gcn_forward.1} parent=0 // pred_check_branch
    %14 = sbr.rel (0) target = $region13
  $region12: #{gcn_forward.1} parent=0 // pred_region
    _
  $region13: #{gcn_forward.1} parent=0 // pred_fallthru
    _
  // Predicated region
  $region14: #{gcn_forward.1} parent=0 // pred_check
    _
  $region15: #{gcn_forward.1} parent=0 // pred_check_branch
    %16 = sbr.rel (0) target = $region17
  $region16: #{gcn_forward.1} parent=0 // pred_region
    _
  $region17: #{gcn_forward.1} parent=0 // pred_fallthru
    _
  %v17 = vld [vmem:[%s0] sm:$0xff]
  %v18 = vld [vmem:[%s0 + $0x8] sm:$0xff]
  %v19 = vld [vmem:[%s0 + $0x10] sm:$0xff]
  %v20 = vld [vmem:[%s0 + $0x18] sm:$0xff]
  %v21 = vld [vmem:[%s0 + $0x20] sm:$0xff]
  %v22 = vld [vmem:[%s0 + $0x28] sm:$0xff]
  %v23 = vld [vmem:[%s0 + $0x30] sm:$0xff]
  %v24 = vld [vmem:[%s0 + $0x38] sm:$0xff]
  %v25 = vld [vmem:[%s0 + $0x40] sm:$0xff]
  %v26 = vld [vmem:[%s0 + $0x48] sm:$0xff]
  %v27 = vld [vmem:[%s0 + $0x50] sm:$0xff]
  %v28 = vld [vmem:[%s0 + $0x58] sm:$0xff]
  %v29 = vld [vmem:[%s0 + $0x60] sm:$0xff]
  %v30 = vld [vmem:[%s0 + $0x68] sm:$0xff]
  %v31 = vld [vmem:[%s0 + $0x70] sm:$0xff]
  %v32 = vld [vmem:[%s0 + $0x78] sm:$0xff]
  %v33 = vld [vmem:[%s1] sm:$0xff]
  %v34 = vld [vmem:[%s1 + $0x8] sm:$0xff]
  %v35 = vld [vmem:[%s1 + $0x10] sm:$0xff]
  %v36 = vld [vmem:[%s1 + $0x18] sm:$0xff]
  %v37 = vld [vmem:[%s1 + $0x20] sm:$0xff]
  %v38 = vld [vmem:[%s1 + $0x28] sm:$0xff]
  %v39 = vld [vmem:[%s1 + $0x30] sm:$0xff]
  %v40 = vld [vmem:[%s1 + $0x38] sm:$0xff]
  %v41 = vld [vmem:[%s1 + $0x40] sm:$0xff]
  %v42 = vld [vmem:[%s1 + $0x48] sm:$0xff]
  %v43 = vld [vmem:[%s1 + $0x50] sm:$0xff]
  %v44 = vld [vmem:[%s1 + $0x58] sm:$0xff]
  %v45 = vld [vmem:[%s1 + $0x60] sm:$0xff]
  %v46 = vld [vmem:[%s1 + $0x68] sm:$0xff]
  %v47 = vld [vmem:[%s1 + $0x70] sm:$0xff]
  %v48 = vld [vmem:[%s1 + $0x78] sm:$0xff]
  %49 = vmatprep.subr.mxu0 0.0
  %50 = vmatpush1.msra.mxu0 %v48
  %51 = vmatprep.subr.mxu0 0.0
  %52 = vmatpush1.msra.mxu0 %v47
  %53 = vmatprep.subr.mxu0 0.0
  %54 = vmatpush1.msra.mxu0 %v46
  %55 = vmatprep.subr.mxu0 0.0
  %56 = vmatpush1.msra.mxu0 %v45
  %57 = vmatprep.subr.mxu0 0.0
  %58 = vmatpush1.msra.mxu0 %v44
  %59 = vmatprep.subr.mxu0 0.0
  %60 = vmatpush1.msra.mxu0 %v43
  %61 = vmatprep.subr.mxu0 0.0
  %62 = vmatpush1.msra.mxu0 %v42
  %63 = vmatprep.subr.mxu0 0.0
  %64 = vmatpush1.msra.mxu0 %v41
  %65 = vmatprep.subr.mxu0 0.0
  %66 = vmatpush1.msra.mxu0 %v40
  %67 = vmatprep.subr.mxu0 0.0
  %68 = vmatpush1.msra.mxu0 %v39
  %69 = vmatprep.subr.mxu0 0.0
  %70 = vmatpush1.msra.mxu0 %v38
  %71 = vmatprep.subr.mxu0 0.0
  %72 = vmatpush1.msra.mxu0 %v37
  %73 = vmatprep.subr.mxu0 0.0
  %74 = vmatpush1.msra.mxu0 %v36
  %75 = vmatprep.subr.mxu0 0.0
  %76 = vmatpush1.msra.mxu0 %v35
  %77 = vmatprep.subr.mxu0 0.0
  %78 = vmatpush1.msra.mxu0 %v34
  %79 = vmatprep.subr.mxu0 0.0
  %80 = vmatpush1.msra.mxu0 %v33
  %81 = vmatprep.subr.mxu0 0.0
  %82 = vmatpush2.msra.mxu0 0.0
  %83 = vmatprep.subr.mxu0 0.0
  %84 = vmatpush2.msra.mxu0 0.0
  %85 = vmatprep.subr.mxu0 0.0
  %86 = vmatpush2.msra.mxu0 0.0
  %87 = vmatprep.subr.mxu0 0.0
  %88 = vmatpush2.msra.mxu0 0.0
  %89 = vmatprep.subr.mxu0 0.0
  %90 = vmatpush2.msra.mxu0 0.0
  %91 = vmatprep.subr.mxu0 0.0
  %92 = vmatpush2.msra.mxu0 0.0
  %93 = vmatprep.subr.mxu0 0.0
  %94 = vmatpush2.msra.mxu0 0.0
  %95 = vmatprep.subr.mxu0 0.0
  %96 = vmatpush2.msra.mxu0 0.0
  %97 = vmatprep.subr.mxu0 0.0
  %98 = vmatpush2.msra.mxu0 0.0
  %99 = vmatprep.subr.mxu0 0.0
  %100 = vmatpush2.msra.mxu0 0.0
  %101 = vmatprep.subr.mxu0 0.0
  %102 = vmatpush2.msra.mxu0 0.0
  %103 = vmatprep.subr.mxu0 0.0
  %104 = vmatpush2.msra.mxu0 0.0
  %105 = vmatprep.subr.mxu0 0.0
  %106 = vmatpush2.msra.mxu0 0.0
  %107 = vmatprep.subr.mxu0 0.0
  %108 = vmatpush2.msra.mxu0 0.0
  %109 = vmatprep.subr.mxu0 0.0
  %110 = vmatpush2.msra.mxu0 0.0
  %111 = vmatprep.subr.mxu0 0.0
  %112 = vmatpush2.msra.mxu0 0.0
  %113 = vmatprep.mubr.f32.mxu0 0.0
  %114 = vmatmul.mubr.f32.gmra.mxu0 %v17
  %v115 = vpop.f32.mrf.mxu0
  %v116 = vadd.f32 0.0, %v115
  %v117 = vpop.f32.mrf.mxu0
  %118 = vmatprep.mubr.f32.mxu0 0.0
  %119 = vmatmul.mubr.f32.gmra.mxu0 %v18
  %v120 = vpop.f32.mrf.mxu0
  %v121 = vadd.f32 0.0, %v120
  %v122 = vpop.f32.mrf.mxu0
  %123 = vmatprep.mubr.f32.mxu0 0.0
  %124 = vmatmul.mubr.f32.gmra.mxu0 %v19
  %v125 = vpop.f32.mrf.mxu0
  %v126 = vadd.f32 0.0, %v125
  %v127 = vpop.f32.mrf.mxu0
  %128 = vmatprep.mubr.f32.mxu0 0.0
  %129 = vmatmul.mubr.f32.gmra.mxu0 %v20
  %v130 = vpop.f32.mrf.mxu0
  %v131 = vadd.f32 0.0, %v130
  %v132 = vpop.f32.mrf.mxu0
  %133 = vmatprep.mubr.f32.mxu0 0.0
  %134 = vmatmul.mubr.f32.gmra.mxu0 %v21
  %v135 = vpop.f32.mrf.mxu0
  %v136 = vadd.f32 0.0, %v135
  %v137 = vpop.f32.mrf.mxu0
  %138 = vmatprep.mubr.f32.mxu0 0.0
  %139 = vmatmul.mubr.f32.gmra.mxu0 %v22
  %v140 = vpop.f32.mrf.mxu0
  %v141 = vadd.f32 0.0, %v140
  %v142 = vpop.f32.mrf.mxu0
  %143 = vmatprep.mubr.f32.mxu0 0.0
  %144 = vmatmul.mubr.f32.gmra.mxu0 %v23
  %v145 = vpop.f32.mrf.mxu0
  %v146 = vadd.f32 0.0, %v145
  %v147 = vpop.f32.mrf.mxu0
  %148 = vmatprep.mubr.f32.mxu0 0.0
  %149 = vmatmul.mubr.f32.gmra.mxu0 %v24
  %v150 = vpop.f32.mrf.mxu0
  %v151 = vadd.f32 0.0, %v150
  %v152 = vpop.f32.mrf.mxu0
  %153 = vmatprep.mubr.f32.mxu0 0.0
  %154 = vmatmul.mubr.f32.gmra.mxu0 %v25
  %v155 = vpop.f32.mrf.mxu0
  %v156 = vadd.f32 0.0, %v155
  %v157 = vpop.f32.mrf.mxu0
  %158 = vmatprep.mubr.f32.mxu0 0.0
  %159 = vmatmul.mubr.f32.gmra.mxu0 %v26
  %v160 = vpop.f32.mrf.mxu0
  %v161 = vadd.f32 0.0, %v160
  %v162 = vpop.f32.mrf.mxu0
  %163 = vmatprep.mubr.f32.mxu0 0.0
  %164 = vmatmul.mubr.f32.gmra.mxu0 %v27
  %v165 = vpop.f32.mrf.mxu0
  %v166 = vadd.f32 0.0, %v165
  %v167 = vpop.f32.mrf.mxu0
  %168 = vmatprep.mubr.f32.mxu0 0.0
  %169 = vmatmul.mubr.f32.gmra.mxu0 %v28
  %v170 = vpop.f32.mrf.mxu0
  %v171 = vadd.f32 0.0, %v170
  %v172 = vpop.f32.mrf.mxu0
  %173 = vmatprep.mubr.f32.mxu0 0.0
  %174 = vmatmul.mubr.f32.gmra.mxu0 %v29
  %v175 = vpop.f32.mrf.mxu0
  %v176 = vadd.f32 0.0, %v175
  %v177 = vpop.f32.mrf.mxu0
  %178 = vmatprep.mubr.f32.mxu0 0.0
  %179 = vmatmul.mubr.f32.gmra.mxu0 %v30
  %v180 = vpop.f32.mrf.mxu0
  %v181 = vadd.f32 0.0, %v180
  %v182 = vpop.f32.mrf.mxu0
  %183 = vmatprep.mubr.f32.mxu0 0.0
  %184 = vmatmul.mubr.f32.gmra.mxu0 %v31
  %v185 = vpop.f32.mrf.mxu0
  %v186 = vadd.f32 0.0, %v185
  %v187 = vpop.f32.mrf.mxu0
  %188 = vmatprep.mubr.f32.mxu0 0.0
  %189 = vmatmul.mubr.f32.gmra.mxu0 %v32
  %v190 = vpop.f32.mrf.mxu0
  %v191 = vadd.f32 0.0, %v190
  %v192 = vpop.f32.mrf.mxu0
  %193 = vdwg.mxu0
  %194 = vst [vmem:[#allocation2] sm:$0xff] %v116
  %195 = vst [vmem:[#allocation2 + $0x8] sm:$0xff] %v121
  %196 = vst [vmem:[#allocation2 + $0x10] sm:$0xff] %v126
  %197 = vst [vmem:[#allocation2 + $0x18] sm:$0xff] %v131
  %198 = vst [vmem:[#allocation2 + $0x20] sm:$0xff] %v136
  %199 = vst [vmem:[#allocation2 + $0x28] sm:$0xff] %v141
  %200 = vst [vmem:[#allocation2 + $0x30] sm:$0xff] %v146
  %201 = vst [vmem:[#allocation2 + $0x38] sm:$0xff] %v151
  %202 = vst [vmem:[#allocation2 + $0x40] sm:$0xff] %v156
  %203 = vst [vmem:[#allocation2 + $0x48] sm:$0xff] %v161
  %204 = vst [vmem:[#allocation2 + $0x50] sm:$0xff] %v166
  %205 = vst [vmem:[#allocation2 + $0x58] sm:$0xff] %v171
  %206 = vst [vmem:[#allocation2 + $0x60] sm:$0xff] %v176
  %207 = vst [vmem:[#allocation2 + $0x68] sm:$0xff] %v181
  %208 = vst [vmem:[#allocation2 + $0x70] sm:$0xff] %v186
  %209 = vst [vmem:[#allocation2 + $0x78] sm:$0xff] %v191
  %v210 = vld [vmem:[%s2] sm:$0xff]
  %v211 = vld [vmem:[%s2 + $0x8] sm:$0xff]
  %v212 = vld [vmem:[%s2 + $0x10] sm:$0xff]
  %v213 = vld [vmem:[%s2 + $0x18] sm:$0xff]
  %v214 = vld [vmem:[%s2 + $0x20] sm:$0xff]
  %v215 = vld [vmem:[%s2 + $0x28] sm:$0xff]
  %v216 = vld [vmem:[%s2 + $0x30] sm:$0xff]
  %v217 = vld [vmem:[%s2 + $0x38] sm:$0xff]
  %v218 = vld [vmem:[%s2 + $0x40] sm:$0xff]
  %v219 = vld [vmem:[%s2 + $0x48] sm:$0xff]
  %v220 = vld [vmem:[%s2 + $0x50] sm:$0xff]
  %v221 = vld [vmem:[%s2 + $0x58] sm:$0xff]
  %v222 = vld [vmem:[%s2 + $0x60] sm:$0xff]
  %v223 = vld [vmem:[%s2 + $0x68] sm:$0xff]
  %v224 = vld [vmem:[%s2 + $0x70] sm:$0xff]
  %v225 = vld [vmem:[%s2 + $0x78] sm:$0xff]
  %v226 = vld [vmem:[#allocation2] sm:$0xff]
  %v227 = vld [vmem:[#allocation2 + $0x8] sm:$0xff]
  %v228 = vld [vmem:[#allocation2 + $0x10] sm:$0xff]
  %v229 = vld [vmem:[#allocation2 + $0x18] sm:$0xff]
  %v230 = vld [vmem:[#allocation2 + $0x20] sm:$0xff]
  %v231 = vld [vmem:[#allocation2 + $0x28] sm:$0xff]
  %v232 = vld [vmem:[#allocation2 + $0x30] sm:$0xff]
  %v233 = vld [vmem:[#allocation2 + $0x38] sm:$0xff]
  %v234 = vld [vmem:[#allocation2 + $0x40] sm:$0xff]
  %v235 = vld [vmem:[#allocation2 + $0x48] sm:$0xff]
  %v236 = vld [vmem:[#allocation2 + $0x50] sm:$0xff]
  %v237 = vld [vmem:[#allocation2 + $0x58] sm:$0xff]
  %v238 = vld [vmem:[#allocation2 + $0x60] sm:$0xff]
  %v239 = vld [vmem:[#allocation2 + $0x68] sm:$0xff]
  %v240 = vld [vmem:[#allocation2 + $0x70] sm:$0xff]
  %v241 = vld [vmem:[#allocation2 + $0x78] sm:$0xff]
  %v242 = vld [vmem:[%s3] sm:$0x1]
  %v244 = vlaneseq
  %v245 = vshrl.u32 %v244, 7
  %v246 = vsub.s32 0, %v245
  %v247 = vrot.slane %v242, %v246
  %249 = vmatprep.subr.mxu0 0.0
  %250 = vmatpush1.msra.mxu0 %v241
  %251 = vmatprep.subr.mxu0 0.0
  %252 = vmatpush1.msra.mxu0 %v240
  %253 = vmatprep.subr.mxu0 0.0
  %254 = vmatpush1.msra.mxu0 %v239
  %255 = vmatprep.subr.mxu0 0.0
  %256 = vmatpush1.msra.mxu0 %v238
  %257 = vmatprep.subr.mxu0 0.0
  %258 = vmatpush1.msra.mxu0 %v237
  %259 = vmatprep.subr.mxu0 0.0
  %260 = vmatpush1.msra.mxu0 %v236
  %261 = vmatprep.subr.mxu0 0.0
  %262 = vmatpush1.msra.mxu0 %v235
  %263 = vmatprep.subr.mxu0 0.0
  %264 = vmatpush1.msra.mxu0 %v234
  %265 = vmatprep.subr.mxu0 0.0
  %266 = vmatpush1.msra.mxu0 %v233
  %267 = vmatprep.subr.mxu0 0.0
  %268 = vmatpush1.msra.mxu0 %v232
  %269 = vmatprep.subr.mxu0 0.0
  %270 = vmatpush1.msra.mxu0 %v231
  %271 = vmatprep.subr.mxu0 0.0
  %272 = vmatpush1.msra.mxu0 %v230
  %273 = vmatprep.subr.mxu0 0.0
  %274 = vmatpush1.msra.mxu0 %v229
  %275 = vmatprep.subr.mxu0 0.0
  %276 = vmatpush1.msra.mxu0 %v228
  %277 = vmatprep.subr.mxu0 0.0
  %278 = vmatpush1.msra.mxu0 %v227
  %279 = vmatprep.subr.mxu0 0.0
  %280 = vmatpush1.msra.mxu0 %v226
  %281 = vmatprep.subr.mxu0 0.0
  %282 = vmatpush2.msra.mxu0 0.0
  %283 = vmatprep.subr.mxu0 0.0
  %284 = vmatpush2.msra.mxu0 0.0
  %285 = vmatprep.subr.mxu0 0.0
  %286 = vmatpush2.msra.mxu0 0.0
  %287 = vmatprep.subr.mxu0 0.0
  %288 = vmatpush2.msra.mxu0 0.0
  %289 = vmatprep.subr.mxu0 0.0
  %290 = vmatpush2.msra.mxu0 0.0
  %291 = vmatprep.subr.mxu0 0.0
  %292 = vmatpush2.msra.mxu0 0.0
  %293 = vmatprep.subr.mxu0 0.0
  %294 = vmatpush2.msra.mxu0 0.0
  %295 = vmatprep.subr.mxu0 0.0
  %296 = vmatpush2.msra.mxu0 0.0
  %297 = vmatprep.subr.mxu0 0.0
  %298 = vmatpush2.msra.mxu0 0.0
  %299 = vmatprep.subr.mxu0 0.0
  %300 = vmatpush2.msra.mxu0 0.0
  %301 = vmatprep.subr.mxu0 0.0
  %302 = vmatpush2.msra.mxu0 0.0
  %303 = vmatprep.subr.mxu0 0.0
  %304 = vmatpush2.msra.mxu0 0.0
  %305 = vmatprep.subr.mxu0 0.0
  %306 = vmatpush2.msra.mxu0 0.0
  %307 = vmatprep.subr.mxu0 0.0
  %308 = vmatpush2.msra.mxu0 0.0
  %309 = vmatprep.subr.mxu0 0.0
  %310 = vmatpush2.msra.mxu0 0.0
  %311 = vmatprep.subr.mxu0 0.0
  %312 = vmatpush2.msra.mxu0 0.0
  %313 = vmatprep.mubr.f32.mxu0 0.0
  %314 = vmatmul.mubr.f32.gmra.mxu0 %v210
  %v315 = vpop.f32.mrf.mxu0
  %v316 = vadd.f32 %v247, %v315
  %v317 = vpop.f32.mrf.mxu0
  %318 = vmatprep.mubr.f32.mxu0 0.0
  %319 = vmatmul.mubr.f32.gmra.mxu0 %v211
  %v320 = vpop.f32.mrf.mxu0
  %v321 = vadd.f32 %v247, %v320
  %v322 = vpop.f32.mrf.mxu0
  %323 = vmatprep.mubr.f32.mxu0 0.0
  %324 = vmatmul.mubr.f32.gmra.mxu0 %v212
  %v325 = vpop.f32.mrf.mxu0
  %v326 = vadd.f32 %v247, %v325
  %v327 = vpop.f32.mrf.mxu0
  %328 = vmatprep.mubr.f32.mxu0 0.0
  %329 = vmatmul.mubr.f32.gmra.mxu0 %v213
  %v330 = vpop.f32.mrf.mxu0
  %v331 = vadd.f32 %v247, %v330
  %v332 = vpop.f32.mrf.mxu0
  %333 = vmatprep.mubr.f32.mxu0 0.0
  %334 = vmatmul.mubr.f32.gmra.mxu0 %v214
  %v335 = vpop.f32.mrf.mxu0
  %v336 = vadd.f32 %v247, %v335
  %v337 = vpop.f32.mrf.mxu0
  %338 = vmatprep.mubr.f32.mxu0 0.0
  %339 = vmatmul.mubr.f32.gmra.mxu0 %v215
  %v340 = vpop.f32.mrf.mxu0
  %v341 = vadd.f32 %v247, %v340
  %v342 = vpop.f32.mrf.mxu0
  %343 = vmatprep.mubr.f32.mxu0 0.0
  %344 = vmatmul.mubr.f32.gmra.mxu0 %v216
  %v345 = vpop.f32.mrf.mxu0
  %v346 = vadd.f32 %v247, %v345
  %v347 = vpop.f32.mrf.mxu0
  %348 = vmatprep.mubr.f32.mxu0 0.0
  %349 = vmatmul.mubr.f32.gmra.mxu0 %v217
  %v350 = vpop.f32.mrf.mxu0
  %v351 = vadd.f32 %v247, %v350
  %v352 = vpop.f32.mrf.mxu0
  %353 = vmatprep.mubr.f32.mxu0 0.0
  %354 = vmatmul.mubr.f32.gmra.mxu0 %v218
  %v355 = vpop.f32.mrf.mxu0
  %v356 = vadd.f32 %v247, %v355
  %v357 = vpop.f32.mrf.mxu0
  %358 = vmatprep.mubr.f32.mxu0 0.0
  %359 = vmatmul.mubr.f32.gmra.mxu0 %v219
  %v360 = vpop.f32.mrf.mxu0
  %v361 = vadd.f32 %v247, %v360
  %v362 = vpop.f32.mrf.mxu0
  %363 = vmatprep.mubr.f32.mxu0 0.0
  %364 = vmatmul.mubr.f32.gmra.mxu0 %v220
  %v365 = vpop.f32.mrf.mxu0
  %v366 = vadd.f32 %v247, %v365
  %v367 = vpop.f32.mrf.mxu0
  %368 = vmatprep.mubr.f32.mxu0 0.0
  %369 = vmatmul.mubr.f32.gmra.mxu0 %v221
  %v370 = vpop.f32.mrf.mxu0
  %v371 = vadd.f32 %v247, %v370
  %v372 = vpop.f32.mrf.mxu0
  %373 = vmatprep.mubr.f32.mxu0 0.0
  %374 = vmatmul.mubr.f32.gmra.mxu0 %v222
  %v375 = vpop.f32.mrf.mxu0
  %v376 = vadd.f32 %v247, %v375
  %v377 = vpop.f32.mrf.mxu0
  %378 = vmatprep.mubr.f32.mxu0 0.0
  %379 = vmatmul.mubr.f32.gmra.mxu0 %v223
  %v380 = vpop.f32.mrf.mxu0
  %v381 = vadd.f32 %v247, %v380
  %v382 = vpop.f32.mrf.mxu0
  %383 = vmatprep.mubr.f32.mxu0 0.0
  %384 = vmatmul.mubr.f32.gmra.mxu0 %v224
  %v385 = vpop.f32.mrf.mxu0
  %v386 = vadd.f32 %v247, %v385
  %v387 = vpop.f32.mrf.mxu0
  %388 = vmatprep.mubr.f32.mxu0 0.0
  %389 = vmatmul.mubr.f32.gmra.mxu0 %v225
  %v390 = vpop.f32.mrf.mxu0
  %v391 = vadd.f32 %v247, %v390
  %v392 = vpop.f32.mrf.mxu0
  %393 = vdwg.mxu0
  %394 = vst [vmem:[%s4] sm:$0xff] %v316
  %395 = vst [vmem:[%s4 + $0x8] sm:$0xff] %v321
  %396 = vst [vmem:[%s4 + $0x10] sm:$0xff] %v326
  %397 = vst [vmem:[%s4 + $0x18] sm:$0xff] %v331
  %398 = vst [vmem:[%s4 + $0x20] sm:$0xff] %v336
  %399 = vst [vmem:[%s4 + $0x28] sm:$0xff] %v341
  %400 = vst [vmem:[%s4 + $0x30] sm:$0xff] %v346
  %401 = vst [vmem:[%s4 + $0x38] sm:$0xff] %v351
  %402 = vst [vmem:[%s4 + $0x40] sm:$0xff] %v356
  %403 = vst [vmem:[%s4 + $0x48] sm:$0xff] %v361
  %404 = vst [vmem:[%s4 + $0x50] sm:$0xff] %v366
  %405 = vst [vmem:[%s4 + $0x58] sm:$0xff] %v371
  %406 = vst [vmem:[%s4 + $0x60] sm:$0xff] %v376
  %407 = vst [vmem:[%s4 + $0x68] sm:$0xff] %v381
  %408 = vst [vmem:[%s4 + $0x70] sm:$0xff] %v386
  %409 = vst [vmem:[%s4 + $0x78] sm:$0xff] %v391
  // Predicated region
  $region18: #{gcn_forward.1} parent=0 // pred_check
    _
  $region19: #{gcn_forward.1} parent=0 // pred_check_branch
    %411 = sbr.rel (0) target = $region21
  $region20: #{gcn_forward.1} parent=0 // pred_region
    _
  $region21: #{gcn_forward.1} parent=0 // pred_fallthru
    _
  // Predicated region
  $region22: #{gcn_forward.1} parent=0 // pred_check
    _
  $region23: #{gcn_forward.1} parent=0 // pred_check_branch
    %413 = sbr.rel (0) target = $region25
  $region24: #{gcn_forward.1} parent=0 // pred_region
    _
  $region25: #{gcn_forward.1} parent=0 // pred_fallthru
    _

</llo_original>
